<compile_context>
chip_gen: v7x
topology: tpu7x:2x2x1
jax: 0.10.0
libtpu: 0.0.40
codegen_flags: <defaults>
</compile_context>

<pallas_src>
import functools
import math

import jax
import jax.numpy as jnp
from jax.experimental import pallas as pl
from jax.experimental.pallas import tpu as pltpu


# ----------------------------------------------------------------------------
# Fused encoder-block kernel (whole batch in one grid step)
# ----------------------------------------------------------------------------
def _encoder_block_kernel(has_mask, *refs):
    if has_mask:
        (x_ref, mask_ref, wqkv_ref, bqkv_ref, wo_ref, bo_ref,
         w1_ref, b1_ref, w2_ref, b2_ref, ln_ref, o_ref) = refs
    else:
        (x_ref, wqkv_ref, bqkv_ref, wo_ref, bo_ref,
         w1_ref, b1_ref, w2_ref, b2_ref, ln_ref, o_ref) = refs
        mask_ref = None

    # x_ref    : (B, S, D) f32 VMEM
    # mask_ref : (D, D)    f32 VMEM additive bias (only when has_mask)
    # wqkv_ref : (D, 3D) bf16; wo_ref: (D, D) bf16; w1_ref: (D, F) bf16;
    # w2_ref   : (F, D) bf16.  Biases are f32 (1, out) rows.
    # ln_ref   : (4,) f32 SMEM = [alpha1, bias1, alpha2, bias2]
    x = x_ref[...]
    _, S, D = x.shape
    eps = 1e-6

    alpha1 = ln_ref[0]
    bias1 = ln_ref[1]
    alpha2 = ln_ref[2]
    bias2 = ln_ref[3]

    def layer_norm(v, alpha, bias):
        # torch: mean/std over last dim, std unbiased (N-1), eps added to std.
        mean = jnp.mean(v, axis=-1, keepdims=True)
        var = jnp.sum((v - mean) * (v - mean), axis=-1, keepdims=True) * (
            1.0 / (D - 1))
        inv = pl.reciprocal(jnp.sqrt(var) + eps, approx=True)   # EUP, ~free
        return alpha * (v - mean) * inv + bias

    # ---- sublayer 1:  x + SelfAttention(LayerNorm(x)) -----------------------
    xn = layer_norm(x, alpha1, bias1)
    xn_b = xn.astype(jnp.bfloat16)

    # Fused QKV projection: one (B,S,D) x (D,3D) matmul, then static slices.
    qkv = jnp.einsum("bsd,de->bse", xn_b, wqkv_ref[...],
                     preferred_element_type=jnp.float32) + bqkv_ref[...]
    q = qkv[:, :, :D]
    k = qkv[:, :, D:2 * D]
    v = qkv[:, :, 2 * D:]

    # torch quirk (h == 1): q/k/v are transposed to (D, S); scores are (D, D)
    # and the scale is 1/sqrt(S) because d_k is read after the transpose.
    scale = 1.0 / math.sqrt(S)
    scores = jnp.einsum("bsd,bse->bde",
                        q.astype(jnp.bfloat16), k.astype(jnp.bfloat16),
                        preferred_element_type=jnp.float32) * scale   # (B,D,D)
    if mask_ref is not None:
        scores = scores + mask_ref[...]          # additive -1e9 bias

    # numerically-stable softmax over the last dim (matches torch.softmax)
    m = jnp.max(scores, axis=-1, keepdims=True)
    e = jnp.exp(scores - m)
    attn = e * pl.reciprocal(jnp.sum(e, axis=-1, keepdims=True), approx=True)

    # (attn @ v^T)^T: back to token-major (B, S, D).
    ctx = jnp.einsum("bde,bse->bsd",
                     attn.astype(jnp.bfloat16), v.astype(jnp.bfloat16),
                     preferred_element_type=jnp.float32)
    attn_out = jnp.einsum("bsd,de->bse", ctx.astype(jnp.bfloat16), wo_ref[...],
                          preferred_element_type=jnp.float32) + bo_ref[...]

    x1 = x + attn_out            # dropout == identity (eval mode)

    # ---- sublayer 2:  x1 + FFN(LayerNorm(x1)) -------------------------------
    x1n = layer_norm(x1, alpha2, bias2)
    h = jnp.maximum(
        jnp.einsum("bsd,df->bsf", x1n.astype(jnp.bfloat16), w1_ref[...],
                   preferred_element_type=jnp.float32) + b1_ref[...],
        0.0)
    ff = jnp.einsum("bsf,fd->bsd", h.astype(jnp.bfloat16), w2_ref[...],
                    preferred_element_type=jnp.float32) + b2_ref[...]

    o_ref[...] = (x1 + ff).astype(o_ref.dtype)


# ----------------------------------------------------------------------------
# Wrapper: layout plumbing + pallas_call
# ----------------------------------------------------------------------------
def encoder_block_forward(x, src_mask, params):
    """x: (B, S, D) f32.  src_mask: None or broadcastable to (1, D, D) where
    0 means 'mask out' (applied to the module's quirky (D, D) score matrix)."""
    B, S, D = x.shape
    F = params["w1"].shape[0]          # d_ff
    has_mask = src_mask is not None

    # torch Linear weight is (out, in); pre-transpose to (in, out), fuse QKV,
    # and cast weights to bf16 (MXU-native).  Biases stay f32.
    wqkv = jnp.concatenate(
        [params["wq"].T, params["wk"].T, params["wv"].T], axis=1
    ).astype(jnp.bfloat16)                                    # (D, 3D)
    bqkv = jnp.concatenate(
        [params["bq"], params["bk"], params["bv"]]).reshape(1, 3 * D)
    wo_t = params["wo"].T.astype(jnp.bfloat16)                # (D, D)
    w1_t = params["w1"].T.astype(jnp.bfloat16)                # (D, F)
    w2_t = params["w2"].T.astype(jnp.bfloat16)                # (F, D)
    bo = params["bo"].reshape(1, D)
    b1 = params["b1"].reshape(1, F)
    b2 = params["b2"].reshape(1, D)

    # LayerNorm scalars -> one small SMEM array.
    ln = jnp.concatenate([params["alpha1"], params["bias1"],
                          params["alpha2"], params["bias2"]]).astype(jnp.float32)

    def full_spec(arr):
        # whole array resident in VMEM (constant index map, single grid step)
        return pl.BlockSpec(arr.shape, lambda b, _nd=arr.ndim: (0,) * _nd)

    inputs = [x]
    in_specs = [pl.BlockSpec((B, S, D), lambda b: (0, 0, 0))]
    if has_mask:
        # Additive mask bias: -1e9 where masked, 0 elsewhere.
        mask_bias = jnp.where(
            jnp.broadcast_to(src_mask, (1, D, D)).reshape(D, D) == 0,
            jnp.float32(-1e9), jnp.float32(0.0))
        inputs.append(mask_bias)
        in_specs.append(full_spec(mask_bias))

    inputs += [wqkv, bqkv, wo_t, bo, w1_t, b1, w2_t, b2, ln]
    in_specs += [
        full_spec(wqkv), full_spec(bqkv),
        full_spec(wo_t), full_spec(bo),
        full_spec(w1_t), full_spec(b1),
        full_spec(w2_t), full_spec(b2),
        pl.BlockSpec((4,), lambda b: (0,),
                     memory_space=pltpu.MemorySpace.SMEM),    # LN scalars
    ]

    grid_spec = pl.GridSpec(
        grid=(1,),                       # whole batch in one step (tiny demo);
        in_specs=in_specs,               # TODO(synk): tile batch/seq for large
        out_specs=pl.BlockSpec((B, S, D), lambda b: (0, 0, 0)),   # shapes.
    )

    return pl.pallas_call(
        functools.partial(_encoder_block_kernel, has_mask),
        out_shape=jax.ShapeDtypeStruct((B, S, D), x.dtype),
        grid_spec=grid_spec,
        compiler_params=pltpu.CompilerParams(
            dimension_semantics=("arbitrary",),
        ),
    )(*inputs)


# ----------------------------------------------------------------------------
# Pure-JAX reference (line-by-line transcription of the PyTorch forward, h==1)
# ----------------------------------------------------------------------------
def encoder_block_reference(x, src_mask, params):
    eps = 1e-6
    B, S, D = x.shape
    hi = jax.lax.Precision.HIGHEST

    def layer_norm(v, alpha, bias):
        mean = jnp.mean(v, axis=-1, keepdims=True)
        var = jnp.sum((v - mean) ** 2, axis=-1, keepdims=True) / (D - 1)
        std = jnp.sqrt(var)
        return alpha * (v - mean) / (std + eps) + bias

    # sublayer 1
    xn = layer_norm(x, params["alpha1"], params["bias1"])
    q = jnp.einsum("bsd,ed->bse", xn, params["wq"], precision=hi) + params["bq"]
    k = jnp.einsum("bsd,ed->bse", xn, params["wk"], precision=hi) + params["bk"]
    v = jnp.einsum("bsd,ed->bse", xn, params["wv"], precision=hi) + params["bv"]
    qt = jnp.swapaxes(q, 1, 2)           # .view(B, S, d_k).transpose(1, 2), h == 1
    kt = jnp.swapaxes(k, 1, 2)
    vt = jnp.swapaxes(v, 1, 2)
    d_k = qt.shape[-1]                   # == S (torch quirk)
    scores = jnp.einsum("bds,bes->bde", qt, kt, precision=hi) / math.sqrt(d_k)
    if src_mask is not None:
        scores = jnp.where(src_mask == 0, -1e9, scores)
    attn = jax.nn.softmax(scores, axis=-1)
    ctx = jnp.einsum("bde,bes->bds", attn, vt, precision=hi)
    ctx = jnp.swapaxes(ctx, 1, 2).reshape(B, -1, D)     # .view(B, -1, h*d_k)
    attn_out = jnp.einsum("bsd,ed->bse", ctx, params["wo"], precision=hi) + params["bo"]
    x1 = x + attn_out
    # sublayer 2
    x1n = layer_norm(x1, params["alpha2"], params["bias2"])
    h1 = jnp.maximum(
        jnp.einsum("bsd,fd->bsf", x1n, params["w1"], precision=hi) + params["b1"], 0.0)
    ff = jnp.einsum("bsf,df->bsd", h1, params["w2"], precision=hi) + params["b2"]
    return x1 + ff


# ----------------------------------------------------------------------------
# Demo / correctness check
# ----------------------------------------------------------------------------
if __name__ == "__main__":
    batch, seq, d_model, d_ff = 2, 8, 32, 64
    # TODO(synk): the original `.view(B, S, d_k)` only type-checks for h == 1
    #             heads (h > 1 raises in PyTorch), so only h == 1 is supported.

    key = jax.random.PRNGKey(0)
    (k_x, k_mask, k_wq, k_bq, k_wk, k_bk, k_wv, k_bv, k_wo, k_bo,
     k_w1, k_b1, k_w2, k_b2, k_a1, k_bias1, k_a2, k_bias2) = jax.random.split(key, 18)

    def lin(kw, kb, out_dim, in_dim):
        s = 1.0 / math.sqrt(in_dim)
        w = jax.random.normal(kw, (out_dim, in_dim), jnp.float32) * s
        b = jax.random.normal(kb, (out_dim,), jnp.float32) * 0.05
        return w, b

    wq, bq = lin(k_wq, k_bq, d_model, d_model)
    wk, bk = lin(k_wk, k_bk, d_model, d_model)
    wv, bv = lin(k_wv, k_bv, d_model, d_model)
    wo, bo = lin(k_wo, k_bo, d_model, d_model)
    w1, b1 = lin(k_w1, k_b1, d_ff, d_model)
    w2, b2 = lin(k_w2, k_b2, d_model, d_ff)

    params = dict(
        wq=wq, bq=bq, wk=wk, bk=bk, wv=wv, bv=bv, wo=wo, bo=bo,
        w1=w1, b1=b1, w2=w2, b2=b2,
        # LayerNormalization parameters (1-element tensors, as in the module),
        # perturbed so the alpha/bias paths are actually exercised.
        alpha1=1.0 + 0.1 * jax.random.normal(k_a1, (1,), jnp.float32),
        bias1=0.1 * jax.random.normal(k_bias1, (1,), jnp.float32),
        alpha2=1.0 + 0.1 * jax.random.normal(k_a2, (1,), jnp.float32),
        bias2=0.1 * jax.random.normal(k_bias2, (1,), jnp.float32),
    )

    x = jax.random.normal(k_x, (batch, seq, d_model), jnp.float32)
    # Binary mask over the module's (d_model, d_model) score matrix.
    src_mask = (jax.random.uniform(k_mask, (1, d_model, d_model)) > 0.2
                ).astype(jnp.float32)

    # no-mask path (maskless kernel variant, no mask DMA)
    out_none = jax.block_until_ready(encoder_block_forward(x, None, params))
    ref_none = encoder_block_reference(x, None, params)
    # masked path (additive mask-bias kernel variant)
    out_mask = jax.block_until_ready(encoder_block_forward(x, src_mask, params))
    ref_mask = encoder_block_reference(x, src_mask, params)

    assert out_none.shape == (batch, seq, d_model)
    # Tolerance covers bf16 MXU operands (f32 accumulation) and the approx EUP
    # reciprocals; structural bugs would be orders of magnitude larger.
    for out, ref in ((out_none, ref_none), (out_mask, ref_mask)):
        err = float(jnp.max(jnp.abs(out - ref)))
        assert jnp.allclose(out, ref, atol=5e-2, rtol=5e-2), f"mismatch: {err}"

    print("KERNEL_OK")
</pallas_src>

<mosaic_0001>
module attributes {stable_mosaic.version = 11 : i64} {
  func.func @_encoder_block_kernel(%arg0: i32, %arg1: memref<2x8x32xf32, #tpu.memory_space<vmem>>, %arg2: memref<32x96xbf16, #tpu.memory_space<vmem>>, %arg3: memref<1x96xf32, #tpu.memory_space<vmem>>, %arg4: memref<32x32xbf16, #tpu.memory_space<vmem>>, %arg5: memref<1x32xf32, #tpu.memory_space<vmem>>, %arg6: memref<32x64xbf16, #tpu.memory_space<vmem>>, %arg7: memref<1x64xf32, #tpu.memory_space<vmem>>, %arg8: memref<64x32xbf16, #tpu.memory_space<vmem>>, %arg9: memref<1x32xf32, #tpu.memory_space<vmem>>, %arg10: memref<4xf32, #tpu.memory_space<smem>>, %arg11: memref<2x8x32xf32, #tpu.memory_space<vmem>>) attributes {dimension_semantics = [#tpu.dimension_semantics<arbitrary>], iteration_bounds = array<i64: 1>, scalar_prefetch = 0 : i64, scratch_operands = 0 : i64, tpu.core_type = #tpu.core_type<tc>, window_params = [{pipeline_mode = #tpu.pipeline_mode<synchronous>, transform_indices = @transform_0, window_bounds = array<i64: 2, 8, 32>}, {pipeline_mode = #tpu.pipeline_mode<synchronous>, transform_indices = @transform_1, window_bounds = array<i64: 32, 96>}, {pipeline_mode = #tpu.pipeline_mode<synchronous>, transform_indices = @transform_2, window_bounds = array<i64: 1, 96>}, {pipeline_mode = #tpu.pipeline_mode<synchronous>, transform_indices = @transform_3, window_bounds = array<i64: 32, 32>}, {pipeline_mode = #tpu.pipeline_mode<synchronous>, transform_indices = @transform_4, window_bounds = array<i64: 1, 32>}, {pipeline_mode = #tpu.pipeline_mode<synchronous>, transform_indices = @transform_5, window_bounds = array<i64: 32, 64>}, {pipeline_mode = #tpu.pipeline_mode<synchronous>, transform_indices = @transform_6, window_bounds = array<i64: 1, 64>}, {pipeline_mode = #tpu.pipeline_mode<synchronous>, transform_indices = @transform_7, window_bounds = array<i64: 64, 32>}, {pipeline_mode = #tpu.pipeline_mode<synchronous>, transform_indices = @transform_8, window_bounds = array<i64: 1, 32>}, {transform_indices = @transform_9, window_bounds = array<i64: 4>}, {pipeline_mode = #tpu.pipeline_mode<synchronous>, transform_indices = @transform_10, window_bounds = array<i64: 2, 8, 32>}]} {
    %c0 = arith.constant 0 : index
    %c0_0 = arith.constant 0 : index
    %c0_1 = arith.constant 0 : index
    %0 = vector.load %arg1[%c0, %c0_0, %c0_1] : memref<2x8x32xf32, #tpu.memory_space<vmem>>, vector<2x8x32xf32>
    %c0_2 = arith.constant 0 : index
    %1 = memref.load %arg10[%c0_2] : memref<4xf32, #tpu.memory_space<smem>>
    %c1 = arith.constant 1 : index
    %2 = memref.load %arg10[%c1] : memref<4xf32, #tpu.memory_space<smem>>
    %c2 = arith.constant 2 : index
    %3 = memref.load %arg10[%c2] : memref<4xf32, #tpu.memory_space<smem>>
    %c3 = arith.constant 3 : index
    %4 = memref.load %arg10[%c3] : memref<4xf32, #tpu.memory_space<smem>>
    %cst = arith.constant dense<0.000000e+00> : vector<2x8xf32>
    %5 = vector.multi_reduction <add>, %0, %cst [2] : vector<2x8x32xf32> to vector<2x8xf32>
    %6 = vector.shape_cast %5 : vector<2x8xf32> to vector<2x8x1xf32>
    %cst_3 = arith.constant 3.200000e+01 : f32
    %7 = vector.broadcast %cst_3 : f32 to vector<2x8x1xf32>
    %8 = arith.divf %6, %7 : vector<2x8x1xf32>
    %9 = vector.broadcast %8 : vector<2x8x1xf32> to vector<2x8x32xf32>
    %10 = arith.subf %0, %9 : vector<2x8x32xf32>
    %11 = vector.broadcast %8 : vector<2x8x1xf32> to vector<2x8x32xf32>
    %12 = arith.subf %0, %11 : vector<2x8x32xf32>
    %13 = arith.mulf %10, %12 : vector<2x8x32xf32>
    %cst_4 = arith.constant dense<0.000000e+00> : vector<2x8xf32>
    %14 = vector.multi_reduction <add>, %13, %cst_4 [2] : vector<2x8x32xf32> to vector<2x8xf32>
    %15 = vector.shape_cast %14 : vector<2x8xf32> to vector<2x8x1xf32>
    %cst_5 = arith.constant 0.0322580636 : f32
    %16 = vector.broadcast %cst_5 : f32 to vector<2x8x1xf32>
    %17 = arith.mulf %15, %16 : vector<2x8x1xf32>
    %18 = math.sqrt %17 : vector<2x8x1xf32>
    %cst_6 = arith.constant 9.99999997E-7 : f32
    %19 = vector.broadcast %cst_6 : f32 to vector<2x8x1xf32>
    %20 = arith.addf %18, %19 : vector<2x8x1xf32>
    %21 = tpu.reciprocal %20 {approx = true} : vector<2x8x1xf32> -> vector<2x8x1xf32>
    %22 = vector.broadcast %8 : vector<2x8x1xf32> to vector<2x8x32xf32>
    %23 = arith.subf %0, %22 : vector<2x8x32xf32>
    %24 = vector.broadcast %1 : f32 to vector<2x8x32xf32>
    %25 = arith.mulf %24, %23 : vector<2x8x32xf32>
    %26 = vector.broadcast %21 : vector<2x8x1xf32> to vector<2x8x32xf32>
    %27 = arith.mulf %25, %26 : vector<2x8x32xf32>
    %28 = vector.broadcast %2 : f32 to vector<2x8x32xf32>
    %29 = arith.addf %27, %28 : vector<2x8x32xf32>
    %30 = arith.truncf %29 : vector<2x8x32xf32> to vector<2x8x32xbf16>
    %c0_7 = arith.constant 0 : index
    %c0_8 = arith.constant 0 : index
    %31 = vector.load %arg2[%c0_7, %c0_8] : memref<32x96xbf16, #tpu.memory_space<vmem>>, vector<32x96xbf16>
    "tpu.trace_start"() <{level = 10 : i32, message = "bsd,de->bse"}> : () -> ()
    %cst_9 = arith.constant dense<0.000000e+00> : vector<2x8x96xf32>
    %32 = tpu.matmul %30, %31, %cst_9 {dimension_numbers = #tpu.dot_dimension_numbers<[2], [0], [0, 1], [1], [0, 0, 0, 1, 1, 1], [], []>} : vector<2x8x32xbf16>, vector<32x96xbf16>, vector<2x8x96xf32> -> vector<2x8x96xf32>
    "tpu.trace_stop"() : () -> ()
    %c0_10 = arith.constant 0 : index
    %c0_11 = arith.constant 0 : index
    %33 = vector.load %arg3[%c0_10, %c0_11] : memref<1x96xf32, #tpu.memory_space<vmem>>, vector<1x96xf32>
    %34 = vector.shape_cast %33 : vector<1x96xf32> to vector<1x1x96xf32>
    %35 = vector.broadcast %34 : vector<1x1x96xf32> to vector<2x8x96xf32>
    %36 = arith.addf %32, %35 : vector<2x8x96xf32>
    %37 = vector.extract_strided_slice %36 {offsets = [0, 0, 0], sizes = [2, 8, 32], strides = [1, 1, 1]} : vector<2x8x96xf32> to vector<2x8x32xf32>
    %38 = vector.extract_strided_slice %36 {offsets = [0, 0, 32], sizes = [2, 8, 32], strides = [1, 1, 1]} : vector<2x8x96xf32> to vector<2x8x32xf32>
    %39 = vector.extract_strided_slice %36 {offsets = [0, 0, 64], sizes = [2, 8, 32], strides = [1, 1, 1]} : vector<2x8x96xf32> to vector<2x8x32xf32>
    %40 = arith.truncf %37 : vector<2x8x32xf32> to vector<2x8x32xbf16>
    %41 = arith.truncf %38 : vector<2x8x32xf32> to vector<2x8x32xbf16>
    "tpu.trace_start"() <{level = 10 : i32, message = "bsd,bse->bde"}> : () -> ()
    %cst_12 = arith.constant dense<0.000000e+00> : vector<2x32x32xf32>
    %42 = tpu.matmul %40, %41, %cst_12 {dimension_numbers = #tpu.dot_dimension_numbers<[1], [1], [2], [2], [0, 0, 0, 2, 1, 2], [0], [0]>} : vector<2x8x32xbf16>, vector<2x8x32xbf16>, vector<2x32x32xf32> -> vector<2x32x32xf32>
    "tpu.trace_stop"() : () -> ()
    %cst_13 = arith.constant 0.353553385 : f32
    %43 = vector.broadcast %cst_13 : f32 to vector<2x32x32xf32>
    %44 = arith.mulf %42, %43 : vector<2x32x32xf32>
    %cst_14 = arith.constant dense<0xFF800000> : vector<2x32xf32>
    %45 = vector.multi_reduction <maximumf>, %44, %cst_14 [2] : vector<2x32x32xf32> to vector<2x32xf32>
    %46 = vector.shape_cast %45 : vector<2x32xf32> to vector<2x32x1xf32>
    %47 = vector.broadcast %46 : vector<2x32x1xf32> to vector<2x32x32xf32>
    %48 = arith.subf %44, %47 : vector<2x32x32xf32>
    %49 = math.exp %48 : vector<2x32x32xf32>
    %cst_15 = arith.constant dense<0.000000e+00> : vector<2x32xf32>
    %50 = vector.multi_reduction <add>, %49, %cst_15 [2] : vector<2x32x32xf32> to vector<2x32xf32>
    %51 = vector.shape_cast %50 : vector<2x32xf32> to vector<2x32x1xf32>
    %52 = tpu.reciprocal %51 {approx = true} : vector<2x32x1xf32> -> vector<2x32x1xf32>
    %53 = vector.broadcast %52 : vector<2x32x1xf32> to vector<2x32x32xf32>
    %54 = arith.mulf %49, %53 : vector<2x32x32xf32>
    %55 = arith.truncf %54 : vector<2x32x32xf32> to vector<2x32x32xbf16>
    %56 = arith.truncf %39 : vector<2x8x32xf32> to vector<2x8x32xbf16>
    "tpu.trace_start"() <{level = 10 : i32, message = "bde,bse->bsd"}> : () -> ()
    %cst_16 = arith.constant dense<0.000000e+00> : vector<2x8x32xf32>
    %57 = tpu.matmul %56, %55, %cst_16 {dimension_numbers = #tpu.dot_dimension_numbers<[2], [2], [1], [1], [0, 0, 0, 1, 1, 1], [0], [0]>} : vector<2x8x32xbf16>, vector<2x32x32xbf16>, vector<2x8x32xf32> -> vector<2x8x32xf32>
    "tpu.trace_stop"() : () -> ()
    %58 = arith.truncf %57 : vector<2x8x32xf32> to vector<2x8x32xbf16>
    %c0_17 = arith.constant 0 : index
    %c0_18 = arith.constant 0 : index
    %59 = vector.load %arg4[%c0_17, %c0_18] : memref<32x32xbf16, #tpu.memory_space<vmem>>, vector<32x32xbf16>
    "tpu.trace_start"() <{level = 10 : i32, message = "bsd,de->bse"}> : () -> ()
    %cst_19 = arith.constant dense<0.000000e+00> : vector<2x8x32xf32>
    %60 = tpu.matmul %58, %59, %cst_19 {dimension_numbers = #tpu.dot_dimension_numbers<[2], [0], [0, 1], [1], [0, 0, 0, 1, 1, 1], [], []>} : vector<2x8x32xbf16>, vector<32x32xbf16>, vector<2x8x32xf32> -> vector<2x8x32xf32>
    "tpu.trace_stop"() : () -> ()
    %c0_20 = arith.constant 0 : index
    %c0_21 = arith.constant 0 : index
    %61 = vector.load %arg5[%c0_20, %c0_21] : memref<1x32xf32, #tpu.memory_space<vmem>>, vector<1x32xf32>
    %62 = vector.shape_cast %61 : vector<1x32xf32> to vector<1x1x32xf32>
    %63 = vector.broadcast %62 : vector<1x1x32xf32> to vector<2x8x32xf32>
    %64 = arith.addf %60, %63 : vector<2x8x32xf32>
    %65 = arith.addf %0, %64 : vector<2x8x32xf32>
    %cst_22 = arith.constant dense<0.000000e+00> : vector<2x8xf32>
    %66 = vector.multi_reduction <add>, %65, %cst_22 [2] : vector<2x8x32xf32> to vector<2x8xf32>
    %67 = vector.shape_cast %66 : vector<2x8xf32> to vector<2x8x1xf32>
    %cst_23 = arith.constant 3.200000e+01 : f32
    %68 = vector.broadcast %cst_23 : f32 to vector<2x8x1xf32>
    %69 = arith.divf %67, %68 : vector<2x8x1xf32>
    %70 = vector.broadcast %69 : vector<2x8x1xf32> to vector<2x8x32xf32>
    %71 = arith.subf %65, %70 : vector<2x8x32xf32>
    %72 = vector.broadcast %69 : vector<2x8x1xf32> to vector<2x8x32xf32>
    %73 = arith.subf %65, %72 : vector<2x8x32xf32>
    %74 = arith.mulf %71, %73 : vector<2x8x32xf32>
    %cst_24 = arith.constant dense<0.000000e+00> : vector<2x8xf32>
    %75 = vector.multi_reduction <add>, %74, %cst_24 [2] : vector<2x8x32xf32> to vector<2x8xf32>
    %76 = vector.shape_cast %75 : vector<2x8xf32> to vector<2x8x1xf32>
    %cst_25 = arith.constant 0.0322580636 : f32
    %77 = vector.broadcast %cst_25 : f32 to vector<2x8x1xf32>
    %78 = arith.mulf %76, %77 : vector<2x8x1xf32>
    %79 = math.sqrt %78 : vector<2x8x1xf32>
    %cst_26 = arith.constant 9.99999997E-7 : f32
    %80 = vector.broadcast %cst_26 : f32 to vector<2x8x1xf32>
    %81 = arith.addf %79, %80 : vector<2x8x1xf32>
    %82 = tpu.reciprocal %81 {approx = true} : vector<2x8x1xf32> -> vector<2x8x1xf32>
    %83 = vector.broadcast %69 : vector<2x8x1xf32> to vector<2x8x32xf32>
    %84 = arith.subf %65, %83 : vector<2x8x32xf32>
    %85 = vector.broadcast %3 : f32 to vector<2x8x32xf32>
    %86 = arith.mulf %85, %84 : vector<2x8x32xf32>
    %87 = vector.broadcast %82 : vector<2x8x1xf32> to vector<2x8x32xf32>
    %88 = arith.mulf %86, %87 : vector<2x8x32xf32>
    %89 = vector.broadcast %4 : f32 to vector<2x8x32xf32>
    %90 = arith.addf %88, %89 : vector<2x8x32xf32>
    %91 = arith.truncf %90 : vector<2x8x32xf32> to vector<2x8x32xbf16>
    %c0_27 = arith.constant 0 : index
    %c0_28 = arith.constant 0 : index
    %92 = vector.load %arg6[%c0_27, %c0_28] : memref<32x64xbf16, #tpu.memory_space<vmem>>, vector<32x64xbf16>
    "tpu.trace_start"() <{level = 10 : i32, message = "bsd,df->bsf"}> : () -> ()
    %cst_29 = arith.constant dense<0.000000e+00> : vector<2x8x64xf32>
    %93 = tpu.matmul %91, %92, %cst_29 {dimension_numbers = #tpu.dot_dimension_numbers<[2], [0], [0, 1], [1], [0, 0, 0, 1, 1, 1], [], []>} : vector<2x8x32xbf16>, vector<32x64xbf16>, vector<2x8x64xf32> -> vector<2x8x64xf32>
    "tpu.trace_stop"() : () -> ()
    %c0_30 = arith.constant 0 : index
    %c0_31 = arith.constant 0 : index
    %94 = vector.load %arg7[%c0_30, %c0_31] : memref<1x64xf32, #tpu.memory_space<vmem>>, vector<1x64xf32>
    %95 = vector.shape_cast %94 : vector<1x64xf32> to vector<1x1x64xf32>
    %96 = vector.broadcast %95 : vector<1x1x64xf32> to vector<2x8x64xf32>
    %97 = arith.addf %93, %96 : vector<2x8x64xf32>
    %cst_32 = arith.constant 0.000000e+00 : f32
    %98 = vector.broadcast %cst_32 : f32 to vector<2x8x64xf32>
    %99 = arith.maximumf %97, %98 : vector<2x8x64xf32>
    %100 = arith.truncf %99 : vector<2x8x64xf32> to vector<2x8x64xbf16>
    %c0_33 = arith.constant 0 : index
    %c0_34 = arith.constant 0 : index
    %101 = vector.load %arg8[%c0_33, %c0_34] : memref<64x32xbf16, #tpu.memory_space<vmem>>, vector<64x32xbf16>
    "tpu.trace_start"() <{level = 10 : i32, message = "bsf,fd->bsd"}> : () -> ()
    %cst_35 = arith.constant dense<0.000000e+00> : vector<2x8x32xf32>
    %102 = tpu.matmul %100, %101, %cst_35 {dimension_numbers = #tpu.dot_dimension_numbers<[2], [0], [0, 1], [1], [0, 0, 0, 1, 1, 1], [], []>} : vector<2x8x64xbf16>, vector<64x32xbf16>, vector<2x8x32xf32> -> vector<2x8x32xf32>
    "tpu.trace_stop"() : () -> ()
    %c0_36 = arith.constant 0 : index
    %c0_37 = arith.constant 0 : index
    %103 = vector.load %arg9[%c0_36, %c0_37] : memref<1x32xf32, #tpu.memory_space<vmem>>, vector<1x32xf32>
    %104 = vector.shape_cast %103 : vector<1x32xf32> to vector<1x1x32xf32>
    %105 = vector.broadcast %104 : vector<1x1x32xf32> to vector<2x8x32xf32>
    %106 = arith.addf %102, %105 : vector<2x8x32xf32>
    %107 = arith.addf %65, %106 : vector<2x8x32xf32>
    %c0_38 = arith.constant 0 : index
    %c0_39 = arith.constant 0 : index
    %c0_40 = arith.constant 0 : index
    %108 = vector.load %arg11[%c0_38, %c0_39, %c0_40] : memref<2x8x32xf32, #tpu.memory_space<vmem>>, vector<2x8x32xf32>
    tpu.vector_store %arg11[%c0_38, %c0_39, %c0_40], %107 {strides = array<i32>} : memref<2x8x32xf32, #tpu.memory_space<vmem>>, vector<2x8x32xf32>,
    return
  }
  func.func @transform_0(%arg0: i32) -> (i32, i32, i32) {
    %c0_i32 = arith.constant 0 : i32
    %c0_i32_0 = arith.constant 0 : i32
    %c0_i32_1 = arith.constant 0 : i32
    %c0_i32_2 = arith.constant 0 : i32
    return %c0_i32, %c0_i32_0, %c0_i32_1 : i32, i32, i32
  }
  func.func @transform_1(%arg0: i32) -> (i32, i32) {
    %c0_i32 = arith.constant 0 : i32
    %c0_i32_0 = arith.constant 0 : i32
    %c0_i32_1 = arith.constant 0 : i32
    return %c0_i32, %c0_i32_0 : i32, i32
  }
  func.func @transform_2(%arg0: i32) -> (i32, i32) {
    %c0_i32 = arith.constant 0 : i32
    %c0_i32_0 = arith.constant 0 : i32
    %c0_i32_1 = arith.constant 0 : i32
    return %c0_i32, %c0_i32_0 : i32, i32
  }
  func.func @transform_3(%arg0: i32) -> (i32, i32) {
    %c0_i32 = arith.constant 0 : i32
    %c0_i32_0 = arith.constant 0 : i32
    %c0_i32_1 = arith.constant 0 : i32
    return %c0_i32, %c0_i32_0 : i32, i32
  }
  func.func @transform_4(%arg0: i32) -> (i32, i32) {
    %c0_i32 = arith.constant 0 : i32
    %c0_i32_0 = arith.constant 0 : i32
    %c0_i32_1 = arith.constant 0 : i32
    return %c0_i32, %c0_i32_0 : i32, i32
  }
  func.func @transform_5(%arg0: i32) -> (i32, i32) {
    %c0_i32 = arith.constant 0 : i32
    %c0_i32_0 = arith.constant 0 : i32
    %c0_i32_1 = arith.constant 0 : i32
    return %c0_i32, %c0_i32_0 : i32, i32
  }
  func.func @transform_6(%arg0: i32) -> (i32, i32) {
    %c0_i32 = arith.constant 0 : i32
    %c0_i32_0 = arith.constant 0 : i32
    %c0_i32_1 = arith.constant 0 : i32
    return %c0_i32, %c0_i32_0 : i32, i32
  }
  func.func @transform_7(%arg0: i32) -> (i32, i32) {
    %c0_i32 = arith.constant 0 : i32
    %c0_i32_0 = arith.constant 0 : i32
    %c0_i32_1 = arith.constant 0 : i32
    return %c0_i32, %c0_i32_0 : i32, i32
  }
  func.func @transform_8(%arg0: i32) -> (i32, i32) {
    %c0_i32 = arith.constant 0 : i32
    %c0_i32_0 = arith.constant 0 : i32
    %c0_i32_1 = arith.constant 0 : i32
    return %c0_i32, %c0_i32_0 : i32, i32
  }
  func.func @transform_9(%arg0: i32) -> i32 {
    %c0_i32 = arith.constant 0 : i32
    %c0_i32_0 = arith.constant 0 : i32
    return %c0_i32 : i32
  }
  func.func @transform_10(%arg0: i32) -> (i32, i32, i32) {
    %c0_i32 = arith.constant 0 : i32
    %c0_i32_0 = arith.constant 0 : i32
    %c0_i32_1 = arith.constant 0 : i32
    %c0_i32_2 = arith.constant 0 : i32
    return %c0_i32, %c0_i32_0, %c0_i32_1 : i32, i32, i32
  }
}

</mosaic_0001>

<llo_original>
// kernel: tpu_custom_call.1
$region0: #{tpu_custom_call.1}
  #allocation0 [shape = 'u32[]', space=smem, size = 0x4, offset = 0x4, fixed_abs, tag = 'smem constant byte address 0x4 - core index']
  #allocation1 [shape = 'u32[144,128]{1,0:T(1,128)}', space=vmem, size = 0x12000, scoped, tag = 'internal scratch']
  %s0 = inlined_call_operand.vmem [shape: f32[2,8,32], index: 0, kind: input, shape index: {}]
  %s1 = inlined_call_operand.vmem [shape: bf16[32,96], index: 1, kind: input, shape index: {}]
  %s2 = inlined_call_operand.vmem [shape: f32[1,96], index: 2, kind: input, shape index: {}]
  %s3 = inlined_call_operand.vmem [shape: bf16[32,32], index: 3, kind: input, shape index: {}]
  %s4 = inlined_call_operand.vmem [shape: f32[1,32], index: 4, kind: input, shape index: {}]
  %s5 = inlined_call_operand.hbm [shape: bf16[32,64], index: 5, kind: input, shape index: {}]
  %s6 = inlined_call_operand.vmem [shape: f32[1,64], index: 6, kind: input, shape index: {}]
  %s7 = inlined_call_operand.vmem [shape: bf16[64,32], index: 7, kind: input, shape index: {}]
  %s8 = inlined_call_operand.vmem [shape: f32[1,32], index: 8, kind: input, shape index: {}]
  %s9 = inlined_call_operand.vmem [shape: f32[4], index: 9, kind: input, shape index: {}]
  %s10 = inlined_call_operand.hbm [shape: f32[2,8,32], index: 10, kind: output, shape index: {}]
  %s11 = sld [smem:[#allocation0]]
  $region58: #{tpu_custom_call.1} parent=0
    _
  %s13 = ssub.s32 1, %s11
  %s14 = scalar_select 0, %s13, %s11
  $region1: #{tpu_custom_call.1} parent=0
    #allocation2 [shape = 'u8[8192]{0}', space=vmem, size = 0x2000, scoped, tag = 'input window, operand 5, single buffered']
    #allocation3 [shape = 's32[1]{0}', space=sflag, size = 0x4, scoped, tag = 'scoped memory for tpu_custom_call.1']
    #allocation4 [shape = 's32[1]{0}', space=sflag, size = 0x4, scoped, tag = 'scoped memory for tpu_custom_call.1']
    #allocation5 [shape = 's32[1]{0}', space=sflag, size = 0x4, scoped, tag = 'scoped memory for tpu_custom_call.1']
    #allocation6 [shape = 'u8[512]{0}', space=smem, size = 0x200, scoped, tag = 'input window, operand 9, single buffered']
    #allocation7 [shape = 'u8[8192]{0}', space=vmem, size = 0x2000, scoped, tag = 'output window, operand 0, single buffered']
    %15 = vsyncpa [#allocation3], 0
    %16 = vsyncpa [#allocation5], 0
    %17 = vsyncpa [#allocation4], 0
    // Predicated region
    $region2: #{tpu_custom_call.1} parent=1 // pred_check
      _
    $region3: #{tpu_custom_call.1} parent=1 // pred_check_branch
      %19 = sbr.rel (0) target = $region5
    $region4: #{tpu_custom_call.1} parent=1 // pred_region
      _
    $region5: #{tpu_custom_call.1} parent=1 // pred_fallthru
      _
    // Predicated region
    $region6: #{tpu_custom_call.1} parent=1 // pred_check
      _
    $region7: #{tpu_custom_call.1} parent=1 // pred_check_branch
      %21 = sbr.rel (0) target = $region9
    $region8: #{tpu_custom_call.1} parent=1 // pred_region
      _
    $region9: #{tpu_custom_call.1} parent=1 // pred_fallthru
      _
    // Predicated region
    $region10: #{tpu_custom_call.1} parent=1 // pred_check
      _
    $region11: #{tpu_custom_call.1} parent=1 // pred_check_branch
      %23 = sbr.rel (0) target = $region13
    $region12: #{tpu_custom_call.1} parent=1 // pred_region
      _
    $region13: #{tpu_custom_call.1} parent=1 // pred_fallthru
      _
    // Predicated region
    $region14: #{tpu_custom_call.1} parent=1 // pred_check
      _
    $region15: #{tpu_custom_call.1} parent=1 // pred_check_branch
      %25 = sbr.rel (0) target = $region17
    $region16: #{tpu_custom_call.1} parent=1 // pred_region
      _
    $region17: #{tpu_custom_call.1} parent=1 // pred_fallthru
      _
    // Predicated region
    $region18: #{tpu_custom_call.1} parent=1 // pred_check
      _
    $region19: #{tpu_custom_call.1} parent=1 // pred_check_branch
      %27 = sbr.rel (0) target = $region21
    $region20: #{tpu_custom_call.1} parent=1 // pred_region
      _
    $region21: #{tpu_custom_call.1} parent=1 // pred_fallthru
      _
    // Predicated region
    $region22: #{tpu_custom_call.1} parent=1 // pred_check
      _
    $region23: #{tpu_custom_call.1} parent=1 // pred_check_branch
      %29 = sbr.rel (0) target = $region25
    $region24: #{tpu_custom_call.1} parent=1 // pred_region
      %s31 = ssub.s32 256, 256
      %32 = vsyncadd [#allocation3], %s31
      %s33 = sshll.u32 [#allocation2], 4
      %s34 = int_to_ptr.vmem [resolvable:$true] %s33
      %39 = dma.hbm_to_vmem [thread:$0]  %s5, 256, %s34, [#allocation3], 64, 64, 4
    $region25: #{tpu_custom_call.1} parent=1 // pred_fallthru
      _
    // Predicated region
    $region26: #{tpu_custom_call.1} parent=1 // pred_check
      _
    $region27: #{tpu_custom_call.1} parent=1 // pred_check_branch
      %41 = sbr.rel (0) target = $region29
    $region28: #{tpu_custom_call.1} parent=1 // pred_region
      _
    $region29: #{tpu_custom_call.1} parent=1 // pred_fallthru
      _
    // Predicated region
    $region30: #{tpu_custom_call.1} parent=1 // pred_check
      _
    $region31: #{tpu_custom_call.1} parent=1 // pred_check_branch
      %43 = sbr.rel (0) target = $region33
    $region32: #{tpu_custom_call.1} parent=1 // pred_region
      _
    $region33: #{tpu_custom_call.1} parent=1 // pred_fallthru
      _
    // Predicated region
    $region34: #{tpu_custom_call.1} parent=1 // pred_check
      _
    $region35: #{tpu_custom_call.1} parent=1 // pred_check_branch
      %45 = sbr.rel (0) target = $region37
    $region36: #{tpu_custom_call.1} parent=1 // pred_region
      _
    $region37: #{tpu_custom_call.1} parent=1 // pred_fallthru
      _
    // Predicated region
    $region38: #{tpu_custom_call.1} parent=1 // pred_check
      _
    $region39: #{tpu_custom_call.1} parent=1 // pred_check_branch
      %47 = sbr.rel (0) target = $region41
    $region40: #{tpu_custom_call.1} parent=1 // pred_region
      %s49 = ssub.s32 16, 16
      %50 = vsyncadd [#allocation5], %s49
      %s52 = sshll.u32 %s9, 4
      %s53 = int_to_ptr.vmem [resolvable:$true] %s52
      %55 = dma.vmem_to_smem %s53, 16, [#allocation6], [#allocation5]
    $region41: #{tpu_custom_call.1} parent=1 // pred_fallthru
      _
    // Predicated region
    $region42: #{tpu_custom_call.1} parent=1 // pred_check
      _
    $region43: #{tpu_custom_call.1} parent=1 // pred_check_branch
      %57 = sbr.rel (0) target = $region45
    $region44: #{tpu_custom_call.1} parent=1 // pred_region
      %58 = dma.done [#allocation3], 256
    $region45: #{tpu_custom_call.1} parent=1 // pred_fallthru
      _
    // Predicated region
    $region46: #{tpu_custom_call.1} parent=1 // pred_check
      _
    $region47: #{tpu_custom_call.1} parent=1 // pred_check_branch
      %60 = sbr.rel (0) target = $region49
    $region48: #{tpu_custom_call.1} parent=1 // pred_region
      %61 = dma.done [#allocation5], 16
    $region49: #{tpu_custom_call.1} parent=1 // pred_fallthru
      _
    %62 = sfence
    %v64 = vld [vmem:[%s0] sm:$0xff]
    %v65 = vld [vmem:[%s0 + $0x8] sm:$0xff]
    %s66 = sld [smem:[#allocation6]]
    %s67 = sld [smem:[#allocation6 + $0x1]]
    %s68 = sld [smem:[#allocation6 + $0x2]]
    %s69 = sld [smem:[#allocation6 + $0x3]]
    %vm70 = vcmask 261120
    %v71 = vsel %vm70, %v64, 0.0
    %72 = vadd.xlane.f32.xlu0 %v71
    %v73 = vpop.xlane.xlu0 %72
    %v74 = vsel %vm70, %v65, 0.0
    %75 = vadd.xlane.f32.xlu0 %v74
    %v76 = vpop.xlane.xlu0 %75
    %v77 = vrcp.pop 32.0
    %v78 = vmul.f32 %v73, %v77
    %v79 = vmul.f32 %v76, %v77
    %v80 = vsub.f32 %v64, %v78
    %v81 = vsub.f32 %v65, %v79
    %v82 = vmul.f32 %v80, %v80
    %v83 = vmul.f32 %v81, %v81
    %v84 = vsel %vm70, %v82, 0.0
    %85 = vadd.xlane.f32.xlu0 %v84
    %v86 = vpop.xlane.xlu0 %85
    %v87 = vsel %vm70, %v83, 0.0
    %88 = vadd.xlane.f32.xlu0 %v87
    %v89 = vpop.xlane.xlu0 %88
    %v90 = vmul.f32 %v86, 0.032258064
    %v91 = vmul.f32 %v89, 0.032258064
    %v92 = vrsqrt.pop %v90
    %v93 = vmul.f32 %v90, %v92
    %vm94 = vcmp.eq.f32.partialorder %v90, inf
    %v95 = vsel %vm94, %v90, %v93
    %vm96 = vcmp.eq.f32.partialorder %v90, 0.0
    %v97 = vand.u32 %v90, 2147483648
    %v98 = vsel %vm96, %v97, %v95
    %v99 = vrsqrt.pop %v91
    %v100 = vmul.f32 %v91, %v99
    %vm101 = vcmp.eq.f32.partialorder %v91, inf
    %v102 = vsel %vm101, %v91, %v100
    %vm103 = vcmp.eq.f32.partialorder %v91, 0.0
    %v104 = vand.u32 %v91, 2147483648
    %v105 = vsel %vm103, %v104, %v102
    %v106 = vadd.f32 %v98, 1e-06
    %v107 = vadd.f32 %v105, 1e-06
    %v108 = vrcp.pop %v106
    %v109 = vrcp.pop %v107
    %v110 = vstv %s66
    %v111 = vmul.f32 %v110, %v80
    %v112 = vmul.f32 %v110, %v81
    %v113 = vmul.f32 %v111, %v108
    %v114 = vmul.f32 %v112, %v109
    %v115 = vstv %s67
    %v116 = vadd.f32 %v113, %v115
    %v117 = vadd.f32 %v114, %v115
    %v118 = vpack.c.bf16 %v116, %v116
    %v119 = vpack.c.bf16 %v117, %v117
    %v120 = vld [vmem:[%s1] sm:$0xf]
    %v121 = vld [vmem:[%s1 + $0x4] sm:$0xf]
    %v122 = vld [vmem:[%s1 + $0x8] sm:$0xf]
    %v123 = vld [vmem:[%s1 + $0xc] sm:$0xf]
    %v124 = vld [vmem:[%s2] sm:$0x1]
    %v126 = vlaneseq
    %v127 = vshrl.u32 %v126, 7
    %v128 = vsub.s32 0, %v127
    %v129 = vrot.slane %v124, %v128
    %v133 = vunpack.c.l.b16 %v118
    %v134 = vunpack.c.l.b16 %v119
    %v135 = vpack.c.b16 %v134, %v133
    %v140 = vunpack.c.l.b16 %v120
    %v141 = vunpack.c.l.b16 %v121
    %v142 = vunpack.c.l.b16 %v122
    %v143 = vunpack.c.l.b16 %v123
    %v144 = vpack.c.b16 %v141, %v140
    %v145 = vpack.c.b16 %v143, %v142
    %v149 = vsel %vm70, %v135, 0
    %151 = vmatprep.subr.bf16.mxu0 0
    %152 = vmatpush1.bf16.msra.mxu0 %v144
    %153 = vmatprep.subr.bf16.mxu0 0
    %154 = vmatpush1.bf16.msra.mxu0 %v145
    %155 = vmatprep.subr.bf16.mxu0 0
    %156 = vmatpush1.bf16.msra.mxu0 0
    %157 = vmatprep.subr.bf16.mxu0 0
    %158 = vmatpush1.bf16.msra.mxu0 0
    %159 = vmatprep.subr.bf16.mxu0 0
    %160 = vmatpush1.bf16.msra.mxu0 0
    %161 = vmatprep.subr.bf16.mxu0 0
    %162 = vmatpush1.bf16.msra.mxu0 0
    %163 = vmatprep.subr.bf16.mxu0 0
    %164 = vmatpush1.bf16.msra.mxu0 0
    %165 = vmatprep.subr.bf16.mxu0 0
    %166 = vmatpush1.bf16.msra.mxu0 0
    %167 = vmatprep.subr.bf16.mxu0 0
    %168 = vmatpush1.bf16.msra.mxu0 0
    %169 = vmatprep.subr.bf16.mxu0 0
    %170 = vmatpush1.bf16.msra.mxu0 0
    %171 = vmatprep.subr.bf16.mxu0 0
    %172 = vmatpush1.bf16.msra.mxu0 0
    %173 = vmatprep.subr.bf16.mxu0 0
    %174 = vmatpush1.bf16.msra.mxu0 0
    %175 = vmatprep.subr.bf16.mxu0 0
    %176 = vmatpush1.bf16.msra.mxu0 0
    %177 = vmatprep.subr.bf16.mxu0 0
    %178 = vmatpush1.bf16.msra.mxu0 0
    %179 = vmatprep.subr.bf16.mxu0 0
    %180 = vmatpush1.bf16.msra.mxu0 0
    %181 = vmatprep.subr.bf16.mxu0 0
    %182 = vmatpush1.bf16.msra.mxu0 0
    %183 = vmatprep.mubr.bf16.mxu0 0
    %184 = vmatmul.mubr.bf16.gmra.mrb[0].mxu0 %v149
    %v185 = vpop.f32.mrb[0].mxu0
    %v186 = vadd.f32 %v129, %v185
    %v187 = vpop.f32.mrb[0].mxu0
    %v188 = vpop.f32.mrb[0].mxu0
    %v189 = vadd.f32 %v129, %v188
    %v190 = vpop.f32.mrb[0].mxu0
    %191 = vdwg.mxu0
    %v192 = vpack.c.bf16 %v186, %v186
    %v193 = vpack.c.bf16 %v189, %v189
    %194 = vxpose.xlu0.c.b16.start [1/8] %v192, 128
    %195 = vxpose.xlu0.c.b16.cont [2/8] 0, 128
    %196 = vxpose.xlu0.c.b16.cont [3/8] 0, 128
    %197 = vxpose.xlu0.c.b16.cont [4/8] 0, 128
    %198 = vxpose.xlu0.c.b16.cont [5/8] 0, 128
    %199 = vxpose.xlu0.c.b16.cont [6/8] 0, 128
    %200 = vxpose.xlu0.c.b16.cont [7/8] 0, 128
    %201 = vxpose.xlu0.c.b16.end [8/8] 0, 128
    %v202 = vpop.trf.xlu0
    %v203 = vpop.trf.xlu0
    %v204 = vpop.trf.xlu0
    %v205 = vpop.trf.xlu0
    %v206 = vpop.trf.xlu0
    %v207 = vpop.trf.xlu0
    %v208 = vpop.trf.xlu0
    %v209 = vpop.trf.xlu0
    %211 = vrot.lane.b32.xlu0 %v192, 96
    %v212 = vpop.permute.xlu0 %211
    %vm213 = vcmask 64512
    %v215 = vsel %vm213, %v202, 0
    %v218 = vsel %vm213, %v203, 0
    %vm220 = vcmask 1043456
    %v222 = vsel %vm220, %v212, 0
    %224 = vmatprep.subr.bf16.mxu0 0
    %225 = vmatpush1.bf16.msra.mxu0 %v222
    %226 = vmatprep.subr.bf16.mxu0 0
    %227 = vmatpush1.bf16.msra.mxu0 0
    %228 = vmatprep.subr.bf16.mxu0 0
    %229 = vmatpush1.bf16.msra.mxu0 0
    %230 = vmatprep.subr.bf16.mxu0 0
    %231 = vmatpush1.bf16.msra.mxu0 0
    %232 = vmatprep.subr.bf16.mxu0 0
    %233 = vmatpush1.bf16.msra.mxu0 0
    %234 = vmatprep.subr.bf16.mxu0 0
    %235 = vmatpush1.bf16.msra.mxu0 0
    %236 = vmatprep.subr.bf16.mxu0 0
    %237 = vmatpush1.bf16.msra.mxu0 0
    %238 = vmatprep.subr.bf16.mxu0 0
    %239 = vmatpush1.bf16.msra.mxu0 0
    %240 = vmatprep.subr.bf16.mxu0 0
    %241 = vmatpush1.bf16.msra.mxu0 0
    %242 = vmatprep.subr.bf16.mxu0 0
    %243 = vmatpush1.bf16.msra.mxu0 0
    %244 = vmatprep.subr.bf16.mxu0 0
    %245 = vmatpush1.bf16.msra.mxu0 0
    %246 = vmatprep.subr.bf16.mxu0 0
    %247 = vmatpush1.bf16.msra.mxu0 0
    %248 = vmatprep.subr.bf16.mxu0 0
    %249 = vmatpush1.bf16.msra.mxu0 0
    %250 = vmatprep.subr.bf16.mxu0 0
    %251 = vmatpush1.bf16.msra.mxu0 0
    %252 = vmatprep.subr.bf16.mxu0 0
    %253 = vmatpush1.bf16.msra.mxu0 0
    %254 = vmatprep.subr.bf16.mxu0 0
    %255 = vmatpush1.bf16.msra.mxu0 0
    %256 = vmatprep.mubr.bf16.mxu0 0
    %257 = vmatmul.mubr.bf16.gmra.mrb[0].mxu0 %v215
    %v258 = vpop.f32.mrb[0].mxu0
    %v259 = vadd.f32 0.0, %v258
    %v260 = vpop.f32.mrb[0].mxu0
    %v261 = vpop.f32.mrb[0].mxu0
    %v262 = vadd.f32 0.0, %v261
    %v263 = vpop.f32.mrb[0].mxu0
    %264 = vmatprep.mubr.bf16.mxu0 0
    %265 = vmatmul.mubr.bf16.gmra.mrb[0].mxu0 %v218
    %v266 = vpop.f32.mrb[0].mxu0
    %v267 = vadd.f32 0.0, %v266
    %v268 = vpop.f32.mrb[0].mxu0
    %v269 = vpop.f32.mrb[0].mxu0
    %v270 = vadd.f32 0.0, %v269
    %v271 = vpop.f32.mrb[0].mxu0
    %272 = vdwg.mxu0
    %273 = vxpose.xlu0.c.b16.start [1/8] %v193, 128
    %274 = vxpose.xlu0.c.b16.cont [2/8] 0, 128
    %275 = vxpose.xlu0.c.b16.cont [3/8] 0, 128
    %276 = vxpose.xlu0.c.b16.cont [4/8] 0, 128
    %277 = vxpose.xlu0.c.b16.cont [5/8] 0, 128
    %278 = vxpose.xlu0.c.b16.cont [6/8] 0, 128
    %279 = vxpose.xlu0.c.b16.cont [7/8] 0, 128
    %280 = vxpose.xlu0.c.b16.end [8/8] 0, 128
    %v281 = vpop.trf.xlu0
    %v282 = vpop.trf.xlu0
    %v283 = vpop.trf.xlu0
    %v284 = vpop.trf.xlu0
    %v285 = vpop.trf.xlu0
    %v286 = vpop.trf.xlu0
    %v287 = vpop.trf.xlu0
    %v288 = vpop.trf.xlu0
    %290 = vrot.lane.b32.xlu0 %v193, 96
    %v291 = vpop.permute.xlu0 %290
    %v293 = vsel %vm213, %v281, 0
    %v296 = vsel %vm213, %v282, 0
    %v299 = vsel %vm220, %v291, 0
    %301 = vmatprep.subr.bf16.mxu0 0
    %302 = vmatpush1.bf16.msra.mxu0 %v299
    %303 = vmatprep.subr.bf16.mxu0 0
    %304 = vmatpush1.bf16.msra.mxu0 0
    %305 = vmatprep.subr.bf16.mxu0 0
    %306 = vmatpush1.bf16.msra.mxu0 0
    %307 = vmatprep.subr.bf16.mxu0 0
    %308 = vmatpush1.bf16.msra.mxu0 0
    %309 = vmatprep.subr.bf16.mxu0 0
    %310 = vmatpush1.bf16.msra.mxu0 0
    %311 = vmatprep.subr.bf16.mxu0 0
    %312 = vmatpush1.bf16.msra.mxu0 0
    %313 = vmatprep.subr.bf16.mxu0 0
    %314 = vmatpush1.bf16.msra.mxu0 0
    %315 = vmatprep.subr.bf16.mxu0 0
    %316 = vmatpush1.bf16.msra.mxu0 0
    %317 = vmatprep.subr.bf16.mxu0 0
    %318 = vmatpush1.bf16.msra.mxu0 0
    %319 = vmatprep.subr.bf16.mxu0 0
    %320 = vmatpush1.bf16.msra.mxu0 0
    %321 = vmatprep.subr.bf16.mxu0 0
    %322 = vmatpush1.bf16.msra.mxu0 0
    %323 = vmatprep.subr.bf16.mxu0 0
    %324 = vmatpush1.bf16.msra.mxu0 0
    %325 = vmatprep.subr.bf16.mxu0 0
    %326 = vmatpush1.bf16.msra.mxu0 0
    %327 = vmatprep.subr.bf16.mxu0 0
    %328 = vmatpush1.bf16.msra.mxu0 0
    %329 = vmatprep.subr.bf16.mxu0 0
    %330 = vmatpush1.bf16.msra.mxu0 0
    %331 = vmatprep.subr.bf16.mxu0 0
    %332 = vmatpush1.bf16.msra.mxu0 0
    %333 = vmatprep.mubr.bf16.mxu0 0
    %334 = vmatmul.mubr.bf16.gmra.mrb[0].mxu0 %v293
    %v335 = vpop.f32.mrb[0].mxu0
    %v336 = vadd.f32 0.0, %v335
    %v337 = vpop.f32.mrb[0].mxu0
    %v338 = vpop.f32.mrb[0].mxu0
    %v339 = vadd.f32 0.0, %v338
    %v340 = vpop.f32.mrb[0].mxu0
    %341 = vmatprep.mubr.bf16.mxu0 0
    %342 = vmatmul.mubr.bf16.gmra.mrb[0].mxu0 %v296
    %v343 = vpop.f32.mrb[0].mxu0
    %v344 = vadd.f32 0.0, %v343
    %v345 = vpop.f32.mrb[0].mxu0
    %v346 = vpop.f32.mrb[0].mxu0
    %v347 = vadd.f32 0.0, %v346
    %v348 = vpop.f32.mrb[0].mxu0
    %349 = vdwg.mxu0
    %v350 = vmul.f32 %v259, 0.35355338
    %v351 = vmul.f32 %v262, 0.35355338
    %v352 = vmul.f32 %v267, 0.35355338
    %v353 = vmul.f32 %v270, 0.35355338
    %v354 = vmul.f32 %v336, 0.35355338
    %v355 = vmul.f32 %v339, 0.35355338
    %v356 = vmul.f32 %v344, 0.35355338
    %v357 = vmul.f32 %v347, 0.35355338
    %v358 = vsel %vm70, %v350, -inf
    %359 = vmax.xlane.f32.xlu0 %v358
    %v360 = vpop.xlane.xlu0 %359
    %v361 = vsel %vm70, %v351, -inf
    %362 = vmax.xlane.f32.xlu0 %v361
    %v363 = vpop.xlane.xlu0 %362
    %v364 = vsel %vm70, %v352, -inf
    %365 = vmax.xlane.f32.xlu0 %v364
    %v366 = vpop.xlane.xlu0 %365
    %v367 = vsel %vm70, %v353, -inf
    %368 = vmax.xlane.f32.xlu0 %v367
    %v369 = vpop.xlane.xlu0 %368
    %v370 = vsel %vm70, %v354, -inf
    %371 = vmax.xlane.f32.xlu0 %v370
    %v372 = vpop.xlane.xlu0 %371
    %v373 = vsel %vm70, %v355, -inf
    %374 = vmax.xlane.f32.xlu0 %v373
    %v375 = vpop.xlane.xlu0 %374
    %v376 = vsel %vm70, %v356, -inf
    %377 = vmax.xlane.f32.xlu0 %v376
    %v378 = vpop.xlane.xlu0 %377
    %v379 = vsel %vm70, %v357, -inf
    %380 = vmax.xlane.f32.xlu0 %v379
    %v381 = vpop.xlane.xlu0 %380
    %v382 = vsub.f32 %v350, %v360
    %v383 = vsub.f32 %v351, %v363
    %v384 = vsub.f32 %v352, %v366
    %v385 = vsub.f32 %v353, %v369
    %v386 = vsub.f32 %v354, %v372
    %v387 = vsub.f32 %v355, %v375
    %v388 = vsub.f32 %v356, %v378
    %v389 = vsub.f32 %v357, %v381
    %v390 = vmul.f32 %v382, 1.442695
    %v391 = vpow.pop %v390
    %v392 = vmul.f32 %v383, 1.442695
    %v393 = vpow.pop %v392
    %v394 = vmul.f32 %v384, 1.442695
    %v395 = vpow.pop %v394
    %v396 = vmul.f32 %v385, 1.442695
    %v397 = vpow.pop %v396
    %v398 = vmul.f32 %v386, 1.442695
    %v399 = vpow.pop %v398
    %v400 = vmul.f32 %v387, 1.442695
    %v401 = vpow.pop %v400
    %v402 = vmul.f32 %v388, 1.442695
    %v403 = vpow.pop %v402
    %v404 = vmul.f32 %v389, 1.442695
    %v405 = vpow.pop %v404
    %v406 = vsel %vm70, %v391, 0.0
    %407 = vadd.xlane.f32.xlu0 %v406
    %v408 = vpop.xlane.xlu0 %407
    %v409 = vsel %vm70, %v393, 0.0
    %410 = vadd.xlane.f32.xlu0 %v409
    %v411 = vpop.xlane.xlu0 %410
    %v412 = vsel %vm70, %v395, 0.0
    %413 = vadd.xlane.f32.xlu0 %v412
    %v414 = vpop.xlane.xlu0 %413
    %v415 = vsel %vm70, %v397, 0.0
    %416 = vadd.xlane.f32.xlu0 %v415
    %v417 = vpop.xlane.xlu0 %416
    %v418 = vsel %vm70, %v399, 0.0
    %419 = vadd.xlane.f32.xlu0 %v418
    %v420 = vpop.xlane.xlu0 %419
    %v421 = vsel %vm70, %v401, 0.0
    %422 = vadd.xlane.f32.xlu0 %v421
    %v423 = vpop.xlane.xlu0 %422
    %v424 = vsel %vm70, %v403, 0.0
    %425 = vadd.xlane.f32.xlu0 %v424
    %v426 = vpop.xlane.xlu0 %425
    %v427 = vsel %vm70, %v405, 0.0
    %428 = vadd.xlane.f32.xlu0 %v427
    %v429 = vpop.xlane.xlu0 %428
    %v430 = vrcp.pop %v408
    %v431 = vrcp.pop %v411
    %v432 = vrcp.pop %v414
    %v433 = vrcp.pop %v417
    %v434 = vrcp.pop %v420
    %v435 = vrcp.pop %v423
    %v436 = vrcp.pop %v426
    %v437 = vrcp.pop %v429
    %v438 = vmul.f32 %v391, %v430
    %v439 = vmul.f32 %v393, %v431
    %v440 = vmul.f32 %v395, %v432
    %v441 = vmul.f32 %v397, %v433
    %v442 = vmul.f32 %v399, %v434
    %v443 = vmul.f32 %v401, %v435
    %v444 = vmul.f32 %v403, %v436
    %v445 = vmul.f32 %v405, %v437
    %v446 = vpack.c.bf16 %v439, %v438
    %v447 = vpack.c.bf16 %v441, %v440
    %v448 = vpack.c.bf16 %v443, %v442
    %v449 = vpack.c.bf16 %v445, %v444
    %450 = vrot.lane.b32.xlu0 %v192, 64
    %v451 = vpop.permute.xlu0 %450
    %v453 = vsel %vm70, %v451, 0
    %v456 = vsel %vm70, %v446, 0
    %v459 = vsel %vm70, %v447, 0
    %461 = vmatprep.subr.bf16.mxu0 0
    %462 = vmatpush1.bf16.xpose.msra.mxu0 %v456
    %463 = vmatprep.subr.bf16.mxu0 0
    %464 = vmatpush1.bf16.xpose.msra.mxu0 %v459
    %465 = vmatprep.subr.bf16.mxu0 0
    %466 = vmatpush1.bf16.xpose.msra.mxu0 0
    %467 = vmatprep.subr.bf16.mxu0 0
    %468 = vmatpush1.bf16.xpose.msra.mxu0 0
    %469 = vmatprep.subr.bf16.mxu0 0
    %470 = vmatpush1.bf16.xpose.msra.mxu0 0
    %471 = vmatprep.subr.bf16.mxu0 0
    %472 = vmatpush1.bf16.xpose.msra.mxu0 0
    %473 = vmatprep.subr.bf16.mxu0 0
    %474 = vmatpush1.bf16.xpose.msra.mxu0 0
    %475 = vmatprep.subr.bf16.mxu0 0
    %476 = vmatpush1.bf16.xpose.msra.mxu0 0
    %477 = vmatprep.subr.bf16.mxu0 0
    %478 = vmatpush1.bf16.xpose.msra.mxu0 0
    %479 = vmatprep.subr.bf16.mxu0 0
    %480 = vmatpush1.bf16.xpose.msra.mxu0 0
    %481 = vmatprep.subr.bf16.mxu0 0
    %482 = vmatpush1.bf16.xpose.msra.mxu0 0
    %483 = vmatprep.subr.bf16.mxu0 0
    %484 = vmatpush1.bf16.xpose.msra.mxu0 0
    %485 = vmatprep.subr.bf16.mxu0 0
    %486 = vmatpush1.bf16.xpose.msra.mxu0 0
    %487 = vmatprep.subr.bf16.mxu0 0
    %488 = vmatpush1.bf16.xpose.msra.mxu0 0
    %489 = vmatprep.subr.bf16.mxu0 0
    %490 = vmatpush1.bf16.xpose.msra.mxu0 0
    %491 = vmatprep.subr.bf16.mxu0 0
    %492 = vmatpush1.bf16.xpose.msra.mxu0 0
    %493 = vmatprep.mubr.bf16.mxu0 0
    %494 = vmatmul.mubr.bf16.gmra.mrb[0].mxu0 %v453
    %v495 = vpop.f32.mrb[0].mxu0
    %v496 = vadd.f32 0.0, %v495
    %v497 = vpop.f32.mrb[0].mxu0
    %v498 = vpop.f32.mrb[0].mxu0
    %v499 = vpop.f32.mrb[0].mxu0
    %500 = vdwg.mxu0
    %501 = vrot.lane.b32.xlu0 %v193, 64
    %v502 = vpop.permute.xlu0 %501
    %v504 = vsel %vm70, %v502, 0
    %v507 = vsel %vm70, %v448, 0
    %v510 = vsel %vm70, %v449, 0
    %512 = vmatprep.subr.bf16.mxu0 0
    %513 = vmatpush1.bf16.xpose.msra.mxu0 %v507
    %514 = vmatprep.subr.bf16.mxu0 0
    %515 = vmatpush1.bf16.xpose.msra.mxu0 %v510
    %516 = vmatprep.subr.bf16.mxu0 0
    %517 = vmatpush1.bf16.xpose.msra.mxu0 0
    %518 = vmatprep.subr.bf16.mxu0 0
    %519 = vmatpush1.bf16.xpose.msra.mxu0 0
    %520 = vmatprep.subr.bf16.mxu0 0
    %521 = vmatpush1.bf16.xpose.msra.mxu0 0
    %522 = vmatprep.subr.bf16.mxu0 0
    %523 = vmatpush1.bf16.xpose.msra.mxu0 0
    %524 = vmatprep.subr.bf16.mxu0 0
    %525 = vmatpush1.bf16.xpose.msra.mxu0 0
    %526 = vmatprep.subr.bf16.mxu0 0
    %527 = vmatpush1.bf16.xpose.msra.mxu0 0
    %528 = vmatprep.subr.bf16.mxu0 0
    %529 = vmatpush1.bf16.xpose.msra.mxu0 0
    %530 = vmatprep.subr.bf16.mxu0 0
    %531 = vmatpush1.bf16.xpose.msra.mxu0 0
    %532 = vmatprep.subr.bf16.mxu0 0
    %533 = vmatpush1.bf16.xpose.msra.mxu0 0
    %534 = vmatprep.subr.bf16.mxu0 0
    %535 = vmatpush1.bf16.xpose.msra.mxu0 0
    %536 = vmatprep.subr.bf16.mxu0 0
    %537 = vmatpush1.bf16.xpose.msra.mxu0 0
    %538 = vmatprep.subr.bf16.mxu0 0
    %539 = vmatpush1.bf16.xpose.msra.mxu0 0
    %540 = vmatprep.subr.bf16.mxu0 0
    %541 = vmatpush1.bf16.xpose.msra.mxu0 0
    %542 = vmatprep.subr.bf16.mxu0 0
    %543 = vmatpush1.bf16.xpose.msra.mxu0 0
    %544 = vmatprep.mubr.bf16.mxu0 0
    %545 = vmatmul.mubr.bf16.gmra.mrb[0].mxu0 %v504
    %v546 = vpop.f32.mrb[0].mxu0
    %v547 = vadd.f32 0.0, %v546
    %v548 = vpop.f32.mrb[0].mxu0
    %v549 = vpop.f32.mrb[0].mxu0
    %v550 = vpop.f32.mrb[0].mxu0
    %551 = vdwg.mxu0
    %v552 = vpack.c.bf16 %v496, %v496
    %v553 = vpack.c.bf16 %v547, %v547
    %v554 = vld [vmem:[%s3] sm:$0xf]
    %v555 = vld [vmem:[%s3 + $0x4] sm:$0xf]
    %v556 = vld [vmem:[%s3 + $0x8] sm:$0xf]
    %v557 = vld [vmem:[%s3 + $0xc] sm:$0xf]
    %v558 = vld [vmem:[%s4] sm:$0x1]
    %v560 = vlaneseq
    %v561 = vshrl.u32 %v560, 7
    %v562 = vsub.s32 0, %v561
    %v563 = vrot.slane %v558, %v562
    %v567 = vunpack.c.l.b16 %v552
    %v568 = vunpack.c.l.b16 %v553
    %v569 = vpack.c.b16 %v568, %v567
    %v574 = vunpack.c.l.b16 %v554
    %v575 = vunpack.c.l.b16 %v555
    %v576 = vunpack.c.l.b16 %v556
    %v577 = vunpack.c.l.b16 %v557
    %v578 = vpack.c.b16 %v575, %v574
    %v579 = vpack.c.b16 %v577, %v576
    %v583 = vsel %vm70, %v569, 0
    %585 = vmatprep.subr.bf16.mxu0 0
    %586 = vmatpush1.bf16.msra.mxu0 %v578
    %587 = vmatprep.subr.bf16.mxu0 0
    %588 = vmatpush1.bf16.msra.mxu0 %v579
    %589 = vmatprep.subr.bf16.mxu0 0
    %590 = vmatpush1.bf16.msra.mxu0 0
    %591 = vmatprep.subr.bf16.mxu0 0
    %592 = vmatpush1.bf16.msra.mxu0 0
    %593 = vmatprep.subr.bf16.mxu0 0
    %594 = vmatpush1.bf16.msra.mxu0 0
    %595 = vmatprep.subr.bf16.mxu0 0
    %596 = vmatpush1.bf16.msra.mxu0 0
    %597 = vmatprep.subr.bf16.mxu0 0
    %598 = vmatpush1.bf16.msra.mxu0 0
    %599 = vmatprep.subr.bf16.mxu0 0
    %600 = vmatpush1.bf16.msra.mxu0 0
    %601 = vmatprep.subr.bf16.mxu0 0
    %602 = vmatpush1.bf16.msra.mxu0 0
    %603 = vmatprep.subr.bf16.mxu0 0
    %604 = vmatpush1.bf16.msra.mxu0 0
    %605 = vmatprep.subr.bf16.mxu0 0
    %606 = vmatpush1.bf16.msra.mxu0 0
    %607 = vmatprep.subr.bf16.mxu0 0
    %608 = vmatpush1.bf16.msra.mxu0 0
    %609 = vmatprep.subr.bf16.mxu0 0
    %610 = vmatpush1.bf16.msra.mxu0 0
    %611 = vmatprep.subr.bf16.mxu0 0
    %612 = vmatpush1.bf16.msra.mxu0 0
    %613 = vmatprep.subr.bf16.mxu0 0
    %614 = vmatpush1.bf16.msra.mxu0 0
    %615 = vmatprep.subr.bf16.mxu0 0
    %616 = vmatpush1.bf16.msra.mxu0 0
    %617 = vmatprep.mubr.bf16.mxu0 0
    %618 = vmatmul.mubr.bf16.gmra.mrb[0].mxu0 %v583
    %v619 = vpop.f32.mrb[0].mxu0
    %v620 = vadd.f32 %v563, %v619
    %v621 = vpop.f32.mrb[0].mxu0
    %v622 = vpop.f32.mrb[0].mxu0
    %v623 = vadd.f32 %v563, %v622
    %v624 = vpop.f32.mrb[0].mxu0
    %625 = vdwg.mxu0
    %v626 = vadd.f32 %v64, %v620
    %v627 = vadd.f32 %v65, %v623
    %v628 = vsel %vm70, %v626, 0.0
    %629 = vadd.xlane.f32.xlu0 %v628
    %v630 = vpop.xlane.xlu0 %629
    %v631 = vsel %vm70, %v627, 0.0
    %632 = vadd.xlane.f32.xlu0 %v631
    %v633 = vpop.xlane.xlu0 %632
    %v634 = vmul.f32 %v630, %v77
    %v635 = vmul.f32 %v633, %v77
    %v636 = vsub.f32 %v626, %v634
    %v637 = vsub.f32 %v627, %v635
    %v638 = vmul.f32 %v636, %v636
    %v639 = vmul.f32 %v637, %v637
    %v640 = vsel %vm70, %v638, 0.0
    %641 = vadd.xlane.f32.xlu0 %v640
    %v642 = vpop.xlane.xlu0 %641
    %v643 = vsel %vm70, %v639, 0.0
    %644 = vadd.xlane.f32.xlu0 %v643
    %v645 = vpop.xlane.xlu0 %644
    %v646 = vmul.f32 %v642, 0.032258064
    %v647 = vmul.f32 %v645, 0.032258064
    %v648 = vrsqrt.pop %v646
    %v649 = vmul.f32 %v646, %v648
    %vm650 = vcmp.eq.f32.partialorder %v646, inf
    %v651 = vsel %vm650, %v646, %v649
    %vm652 = vcmp.eq.f32.partialorder %v646, 0.0
    %v653 = vand.u32 %v646, 2147483648
    %v654 = vsel %vm652, %v653, %v651
    %v655 = vrsqrt.pop %v647
    %v656 = vmul.f32 %v647, %v655
    %vm657 = vcmp.eq.f32.partialorder %v647, inf
    %v658 = vsel %vm657, %v647, %v656
    %vm659 = vcmp.eq.f32.partialorder %v647, 0.0
    %v660 = vand.u32 %v647, 2147483648
    %v661 = vsel %vm659, %v660, %v658
    %v662 = vadd.f32 %v654, 1e-06
    %v663 = vadd.f32 %v661, 1e-06
    %v664 = vrcp.pop %v662
    %v665 = vrcp.pop %v663
    %v666 = vstv %s68
    %v667 = vmul.f32 %v666, %v636
    %v668 = vmul.f32 %v666, %v637
    %v669 = vmul.f32 %v667, %v664
    %v670 = vmul.f32 %v668, %v665
    %v671 = vstv %s69
    %v672 = vadd.f32 %v669, %v671
    %v673 = vadd.f32 %v670, %v671
    %v674 = vpack.c.bf16 %v672, %v672
    %v675 = vpack.c.bf16 %v673, %v673
    %v676 = vld [vmem:[#allocation2] sm:$0xf]
    %v677 = vld [vmem:[#allocation2 + $0x4] sm:$0xf]
    %v678 = vld [vmem:[#allocation2 + $0x8] sm:$0xf]
    %v679 = vld [vmem:[#allocation2 + $0xc] sm:$0xf]
    %v680 = vld [vmem:[%s6] sm:$0x1]
    %v682 = vlaneseq
    %v683 = vshrl.u32 %v682, 7
    %v684 = vsub.s32 0, %v683
    %v685 = vrot.slane %v680, %v684
    %v689 = vunpack.c.l.b16 %v674
    %v690 = vunpack.c.l.b16 %v675
    %v691 = vpack.c.b16 %v690, %v689
    %v696 = vunpack.c.l.b16 %v676
    %v697 = vunpack.c.l.b16 %v677
    %v698 = vunpack.c.l.b16 %v678
    %v699 = vunpack.c.l.b16 %v679
    %v700 = vpack.c.b16 %v697, %v696
    %v701 = vpack.c.b16 %v699, %v698
    %v705 = vsel %vm70, %v691, 0
    %707 = vmatprep.subr.bf16.mxu0 0
    %708 = vmatpush1.bf16.msra.mxu0 %v700
    %709 = vmatprep.subr.bf16.mxu0 0
    %710 = vmatpush1.bf16.msra.mxu0 %v701
    %711 = vmatprep.subr.bf16.mxu0 0
    %712 = vmatpush1.bf16.msra.mxu0 0
    %713 = vmatprep.subr.bf16.mxu0 0
    %714 = vmatpush1.bf16.msra.mxu0 0
    %715 = vmatprep.subr.bf16.mxu0 0
    %716 = vmatpush1.bf16.msra.mxu0 0
    %717 = vmatprep.subr.bf16.mxu0 0
    %718 = vmatpush1.bf16.msra.mxu0 0
    %719 = vmatprep.subr.bf16.mxu0 0
    %720 = vmatpush1.bf16.msra.mxu0 0
    %721 = vmatprep.subr.bf16.mxu0 0
    %722 = vmatpush1.bf16.msra.mxu0 0
    %723 = vmatprep.subr.bf16.mxu0 0
    %724 = vmatpush1.bf16.msra.mxu0 0
    %725 = vmatprep.subr.bf16.mxu0 0
    %726 = vmatpush1.bf16.msra.mxu0 0
    %727 = vmatprep.subr.bf16.mxu0 0
    %728 = vmatpush1.bf16.msra.mxu0 0
    %729 = vmatprep.subr.bf16.mxu0 0
    %730 = vmatpush1.bf16.msra.mxu0 0
    %731 = vmatprep.subr.bf16.mxu0 0
    %732 = vmatpush1.bf16.msra.mxu0 0
    %733 = vmatprep.subr.bf16.mxu0 0
    %734 = vmatpush1.bf16.msra.mxu0 0
    %735 = vmatprep.subr.bf16.mxu0 0
    %736 = vmatpush1.bf16.msra.mxu0 0
    %737 = vmatprep.subr.bf16.mxu0 0
    %738 = vmatpush1.bf16.msra.mxu0 0
    %739 = vmatprep.mubr.bf16.mxu0 0
    %740 = vmatmul.mubr.bf16.gmra.mrb[0].mxu0 %v705
    %v741 = vpop.f32.mrb[0].mxu0
    %v742 = vadd.f32 %v685, %v741
    %v743 = vpop.f32.mrb[0].mxu0
    %v744 = vpop.f32.mrb[0].mxu0
    %v745 = vadd.f32 %v685, %v744
    %v746 = vpop.f32.mrb[0].mxu0
    %747 = vdwg.mxu0
    %v748 = vmax.f32 %v742, 0.0
    %v749 = vmax.f32 %v745, 0.0
    %v750 = vpack.c.bf16 %v748, %v748
    %v751 = vpack.c.bf16 %v749, %v749
    %v752 = vld [vmem:[%s7] sm:$0xf]
    %v753 = vld [vmem:[%s7 + $0x4] sm:$0xf]
    %v754 = vld [vmem:[%s7 + $0x8] sm:$0xf]
    %v755 = vld [vmem:[%s7 + $0xc] sm:$0xf]
    %v756 = vld [vmem:[%s7 + $0x10] sm:$0xf]
    %v757 = vld [vmem:[%s7 + $0x14] sm:$0xf]
    %v758 = vld [vmem:[%s7 + $0x18] sm:$0xf]
    %v759 = vld [vmem:[%s7 + $0x1c] sm:$0xf]
    %v760 = vld [vmem:[%s8] sm:$0x1]
    %v762 = vlaneseq
    %v763 = vshrl.u32 %v762, 7
    %v764 = vsub.s32 0, %v763
    %v765 = vrot.slane %v760, %v764
    %v769 = vunpack.c.l.b16 %v750
    %v770 = vunpack.c.l.b16 %v751
    %v771 = vpack.c.b16 %v770, %v769
    %v780 = vunpack.c.l.b16 %v752
    %v781 = vunpack.c.l.b16 %v753
    %v782 = vunpack.c.l.b16 %v754
    %v783 = vunpack.c.l.b16 %v755
    %v784 = vunpack.c.l.b16 %v756
    %v785 = vunpack.c.l.b16 %v757
    %v786 = vunpack.c.l.b16 %v758
    %v787 = vunpack.c.l.b16 %v759
    %v788 = vpack.c.b16 %v781, %v780
    %v789 = vpack.c.b16 %v783, %v782
    %v790 = vpack.c.b16 %v785, %v784
    %v791 = vpack.c.b16 %v787, %v786
    %vm796 = vcmask 523264
    %v798 = vsel %vm796, %v771, 0
    %800 = vmatprep.subr.bf16.mxu0 0
    %801 = vmatpush1.bf16.msra.mxu0 %v788
    %802 = vmatprep.subr.bf16.mxu0 0
    %803 = vmatpush1.bf16.msra.mxu0 %v789
    %804 = vmatprep.subr.bf16.mxu0 0
    %805 = vmatpush1.bf16.msra.mxu0 %v790
    %806 = vmatprep.subr.bf16.mxu0 0
    %807 = vmatpush1.bf16.msra.mxu0 %v791
    %808 = vmatprep.subr.bf16.mxu0 0
    %809 = vmatpush1.bf16.msra.mxu0 0
    %810 = vmatprep.subr.bf16.mxu0 0
    %811 = vmatpush1.bf16.msra.mxu0 0
    %812 = vmatprep.subr.bf16.mxu0 0
    %813 = vmatpush1.bf16.msra.mxu0 0
    %814 = vmatprep.subr.bf16.mxu0 0
    %815 = vmatpush1.bf16.msra.mxu0 0
    %816 = vmatprep.subr.bf16.mxu0 0
    %817 = vmatpush1.bf16.msra.mxu0 0
    %818 = vmatprep.subr.bf16.mxu0 0
    %819 = vmatpush1.bf16.msra.mxu0 0
    %820 = vmatprep.subr.bf16.mxu0 0
    %821 = vmatpush1.bf16.msra.mxu0 0
    %822 = vmatprep.subr.bf16.mxu0 0
    %823 = vmatpush1.bf16.msra.mxu0 0
    %824 = vmatprep.subr.bf16.mxu0 0
    %825 = vmatpush1.bf16.msra.mxu0 0
    %826 = vmatprep.subr.bf16.mxu0 0
    %827 = vmatpush1.bf16.msra.mxu0 0
    %828 = vmatprep.subr.bf16.mxu0 0
    %829 = vmatpush1.bf16.msra.mxu0 0
    %830 = vmatprep.subr.bf16.mxu0 0
    %831 = vmatpush1.bf16.msra.mxu0 0
    %832 = vmatprep.mubr.bf16.mxu0 0
    %833 = vmatmul.mubr.bf16.gmra.mrb[0].mxu0 %v798
    %v834 = vpop.f32.mrb[0].mxu0
    %v835 = vadd.f32 %v765, %v834
    %v836 = vpop.f32.mrb[0].mxu0
    %v837 = vpop.f32.mrb[0].mxu0
    %v838 = vadd.f32 %v765, %v837
    %v839 = vpop.f32.mrb[0].mxu0
    %840 = vdwg.mxu0
    %v841 = vadd.f32 %v626, %v835
    %v842 = vadd.f32 %v627, %v838
    %843 = vst.msk [vmem:[#allocation7] sm:$0xff] %vm70, %v841
    %844 = vst.msk [vmem:[#allocation7 + $0x8] sm:$0xff] %vm70, %v842
    // Predicated region
    $region50: #{tpu_custom_call.1} parent=1 // pred_check
      _
    $region51: #{tpu_custom_call.1} parent=1 // pred_check_branch
      %846 = sbr.rel (0) target = $region53
    $region52: #{tpu_custom_call.1} parent=1 // pred_region
      %s848 = ssub.s32 256, 256
      %849 = vsyncadd [#allocation4], %s848
      %s850 = sshll.u32 [#allocation7], 4
      %s851 = int_to_ptr.vmem [resolvable:$true] %s850
      %856 = dma.vmem_to_hbm [thread:$0]  %s851, 256, %s10, [#allocation4], 128, 128, 8
    $region53: #{tpu_custom_call.1} parent=1 // pred_fallthru
      _
    // Predicated region
    $region54: #{tpu_custom_call.1} parent=1 // pred_check
      _
    $region55: #{tpu_custom_call.1} parent=1 // pred_check_branch
      %858 = sbr.rel (0) target = $region57
    $region56: #{tpu_custom_call.1} parent=1 // pred_region
      %859 = dma.done [#allocation4], 256
    $region57: #{tpu_custom_call.1} parent=1 // pred_fallthru
      _
    %860 = vsyncpa [#allocation3], 1
    %861 = vsyncpa [#allocation4], 1
    %862 = vsyncpa [#allocation5], 1

</llo_original>
